<compile_context>
chip_gen: v5e
topology: v5e:2x2
jax: 0.10.0
libtpu: 0.0.40
codegen_flags: <defaults>
</compile_context>

<pallas_src>
import functools

import jax
import jax.numpy as jnp
from jax.experimental import pallas as pl
from jax.experimental.pallas import tpu as pltpu


def _round_up(x, m):
    return ((x + m - 1) // m) * m


# ---------------------------------------------------------------------------
# Kernels
# ---------------------------------------------------------------------------
def _matmul_kernel(x_ref, w_ref, o_ref):
    """Full-K tile: one MXU pass per (tm, tn) output block, no accumulator."""
    o_ref[...] = jnp.dot(
        x_ref[...], w_ref[...], preferred_element_type=jnp.float32
    ).astype(o_ref.dtype)


def _matmul_kernel_kred(x_ref, w_ref, o_ref, acc_ref):
    """K-reduction fallback: f32 accumulator, K is the last (arbitrary) axis."""
    @pl.when(pl.program_id(2) == 0)
    def _():
        acc_ref[...] = jnp.zeros_like(acc_ref)

    acc_ref[...] += jnp.dot(
        x_ref[...], w_ref[...], preferred_element_type=jnp.float32
    )

    @pl.when(pl.program_id(2) == pl.num_programs(2) - 1)
    def _():
        o_ref[...] = acc_ref[...].astype(o_ref.dtype)


# ---------------------------------------------------------------------------
# Tile selection
# ---------------------------------------------------------------------------
# Conservative: double-buffered tiles must fit well under v7x's 64 MiB VMEM.
_VMEM_TILE_BUDGET = 24 * 1024 * 1024
_VMEM_LIMIT_BYTES = 48 * 1024 * 1024


def _choose_tiles(M, K, N, in_bytes, out_bytes, max_tk):
    """Return (tm, tn, tk, reduce_k)."""
    tm = min(_round_up(M, 8), 256)          # big output rows, but never beyond M pad
    tn = min(_round_up(N, 128), 512)        # lane-dense output (multiple of 128)
    K_pad = _round_up(K, 128)

    def footprint(tk, reduced):
        buf = 2 * (tm * tk * in_bytes + tk * tn * in_bytes + tm * tn * out_bytes)
        if reduced:
            buf += tm * tn * 4
        return buf

    tk_cap = K_pad if max_tk is None else min(_round_up(min(max_tk, K_pad), 128), K_pad)

    # Preferred path: single K block, no reduction axis / accumulator.
    if tk_cap == K_pad and footprint(K_pad, False) <= _VMEM_TILE_BUDGET:
        return tm, tn, K_pad, False

    # Fallback: K reduction with the largest tk that fits the VMEM budget.
    tk = tk_cap
    while tk > 128 and footprint(tk, True) > _VMEM_TILE_BUDGET:
        tk -= 128
    return tm, tn, tk, True


# ---------------------------------------------------------------------------
# Forward wrapper
# ---------------------------------------------------------------------------
@functools.partial(jax.jit, static_argnames=("compute_dtype", "max_tk"))
def classifier_forward(x, w_t, *, compute_dtype=None, max_tk=None):
    """y = x @ w_t  (x: (B, D), w_t: (D, C)) -> (B, C) in x's original dtype.

    compute_dtype: optionally cast x and w_t (e.g. jnp.bfloat16) for the MXU;
                   accumulation stays f32.
    max_tk:        optional cap on the K tile (mainly to exercise the
                   reduction-path kernel).
    """
    M, K = x.shape
    K2, N = w_t.shape
    assert K == K2, "feature_dim mismatch between x and w_t"

    out_dtype = x.dtype
    if compute_dtype is not None:
        x = x.astype(compute_dtype)
        w_t = w_t.astype(compute_dtype)

    in_bytes = jnp.dtype(x.dtype).itemsize
    out_bytes = jnp.dtype(out_dtype).itemsize
    tm, tn, tk, reduce_k = _choose_tiles(M, K, N, in_bytes, out_bytes, max_tk)

    M_pad = _round_up(M, tm)
    N_pad = _round_up(N, tn)
    K_pad = _round_up(K, tk)

    if (M_pad, K_pad) != (M, K):
        x = jnp.pad(x, ((0, M_pad - M), (0, K_pad - K)))
    if (K_pad, N_pad) != (K, N):
        w_t = jnp.pad(w_t, ((0, K_pad - K), (0, N_pad - N)))

    if reduce_k:
        grid = (M_pad // tm, N_pad // tn, K_pad // tk)
        kernel = _matmul_kernel_kred
        in_specs = [
            pl.BlockSpec((tm, tk), lambda i, j, k: (i, k)),
            pl.BlockSpec((tk, tn), lambda i, j, k: (k, j)),
        ]
        out_specs = pl.BlockSpec((tm, tn), lambda i, j, k: (i, j))
        scratch_shapes = [pltpu.VMEM((tm, tn), jnp.float32)]
        dims = ("parallel", "parallel", "arbitrary")
    else:
        grid = (M_pad // tm, N_pad // tn)
        kernel = _matmul_kernel
        in_specs = [
            pl.BlockSpec((tm, tk), lambda i, j: (i, 0)),
            pl.BlockSpec((tk, tn), lambda i, j: (0, j)),
        ]
        out_specs = pl.BlockSpec((tm, tn), lambda i, j: (i, j))
        scratch_shapes = []
        dims = ("parallel", "parallel")

    y = pl.pallas_call(
        kernel,
        out_shape=jax.ShapeDtypeStruct((M_pad, N_pad), out_dtype),
        grid_spec=pltpu.PrefetchScalarGridSpec(
            num_scalar_prefetch=0,
            grid=grid,
            in_specs=in_specs,
            out_specs=out_specs,
            scratch_shapes=scratch_shapes,
        ),
        compiler_params=pltpu.CompilerParams(
            dimension_semantics=dims,
            vmem_limit_bytes=_VMEM_LIMIT_BYTES,
        ),
    )(x, w_t)

    if (M_pad, N_pad) != (M, N):
        y = y[:M, :N]
    return y


# ---------------------------------------------------------------------------
# Demo / correctness check
# ---------------------------------------------------------------------------
if __name__ == "__main__":
    # Small shapes consistent with the module: batch=8, feature_dim=256, num_classes=128.
    B, FEATURE_DIM, NUM_CLASSES = 8, 256, 128

    key = jax.random.PRNGKey(0)
    kx, kw = jax.random.split(key)

    x = jax.random.normal(kx, (B, FEATURE_DIM), dtype=jnp.float32)
    # nn.init.normal_(weight, std=0.001); PyTorch weight shape (num_classes, feature_dim).
    w = 0.001 * jax.random.normal(kw, (NUM_CLASSES, FEATURE_DIM), dtype=jnp.float32)
    w_t = w.T  # (feature_dim, num_classes)

    y_ref = x @ w.T

    # 1) Default f32 path: single K block, no reduction axis / accumulator.
    y = classifier_forward(x, w_t)
    jax.block_until_ready(y)
    assert y.shape == (B, NUM_CLASSES)
    assert jnp.allclose(y, y_ref, atol=1e-5, rtol=1e-5)

    # 2) K-reduction fallback path (exercised by capping the K tile).
    y_red = classifier_forward(x, w_t, max_tk=128)
    jax.block_until_ready(y_red)
    assert jnp.allclose(y_red, y_ref, atol=1e-5, rtol=1e-5)

    # 3) bf16 weights/activations (halved weight DMA), f32 accumulation.
    y_bf16 = classifier_forward(x, w_t, compute_dtype=jnp.bfloat16)
    jax.block_until_ready(y_bf16)
    assert jnp.allclose(y_bf16, y_ref, atol=5e-4, rtol=2e-2)

    print("KERNEL_OK")
</pallas_src>

<mosaic_0001>
module attributes {stable_mosaic.version = 11 : i64} {
  func.func @_matmul_kernel(%arg0: i32, %arg1: i32, %arg2: memref<8x256xf32, #tpu.memory_space<vmem>>, %arg3: memref<256x128xf32, #tpu.memory_space<vmem>>, %arg4: memref<8x128xf32, #tpu.memory_space<vmem>>) attributes {dimension_semantics = [#tpu.dimension_semantics<parallel>, #tpu.dimension_semantics<parallel>], iteration_bounds = array<i64: 1, 1>, scalar_prefetch = 0 : i64, scratch_operands = 0 : i64, tpu.core_type = #tpu.core_type<tc>, window_params = [{transform_indices = @transform_0, window_bounds = array<i64: 8, 256>}, {transform_indices = @transform_1, window_bounds = array<i64: 256, 128>}, {transform_indices = @transform_2, window_bounds = array<i64: 8, 128>}]} {
    %c0 = arith.constant 0 : index
    %c0_0 = arith.constant 0 : index
    %0 = vector.load %arg2[%c0, %c0_0] : memref<8x256xf32, #tpu.memory_space<vmem>>, vector<8x256xf32>
    %c0_1 = arith.constant 0 : index
    %c0_2 = arith.constant 0 : index
    %1 = vector.load %arg3[%c0_1, %c0_2] : memref<256x128xf32, #tpu.memory_space<vmem>>, vector<256x128xf32>
    %cst = arith.constant dense<0.000000e+00> : vector<8x128xf32>
    %2 = tpu.matmul %0, %1, %cst {dimension_numbers = #tpu.dot_dimension_numbers<[1], [0], [0], [1], [0, 0, 1, 1], [], []>} : vector<8x256xf32>, vector<256x128xf32>, vector<8x128xf32> -> vector<8x128xf32>
    %c0_3 = arith.constant 0 : index
    %c0_4 = arith.constant 0 : index
    %3 = vector.load %arg4[%c0_3, %c0_4] : memref<8x128xf32, #tpu.memory_space<vmem>>, vector<8x128xf32>
    tpu.vector_store %arg4[%c0_3, %c0_4], %2 {strides = array<i32>} : memref<8x128xf32, #tpu.memory_space<vmem>>, vector<8x128xf32>,
    return
  }
  func.func @transform_0(%arg0: i32, %arg1: i32) -> (i32, i32) {
    %c0_i32 = arith.constant 0 : i32
    %c0_i32_0 = arith.constant 0 : i32
    return %arg0, %c0_i32 : i32, i32
  }
  func.func @transform_1(%arg0: i32, %arg1: i32) -> (i32, i32) {
    %c0_i32 = arith.constant 0 : i32
    %c0_i32_0 = arith.constant 0 : i32
    return %c0_i32, %arg1 : i32, i32
  }
  func.func @transform_2(%arg0: i32, %arg1: i32) -> (i32, i32) {
    %c0_i32 = arith.constant 0 : i32
    return %arg0, %arg1 : i32, i32
  }
}

</mosaic_0001>

<llo_original>
// kernel: classifier_forward.1
$region0: #{classifier_forward.1}
  #allocation0 [shape = 'u32[]', space=smem, size = 0x4, offset = 0x4, fixed_abs, tag = 'smem constant byte address 0x4 - core index']
  #allocation1 [shape = 'u32[72,128]{1,0:T(1,128)}', space=vmem, size = 0x9000, scoped, tag = 'internal scratch']
  %s0 = inlined_call_operand.hbm [shape: f32[8,256], index: 0, kind: input, shape index: {}]
  %s1 = inlined_call_operand.hbm [shape: f32[256,128], index: 1, kind: input, shape index: {}]
  %s2 = inlined_call_operand.hbm [shape: f32[8,128], index: 2, kind: output, shape index: {}]
  %s3 = sld [smem:[#allocation0]]
  $region26: #{classifier_forward.1} parent=0
    _
  %s5 = ssub.s32 1, %s3
  %s6 = scalar_select 0, %s5, %s3
  $region1: #{classifier_forward.1} parent=0
    #allocation2 [shape = 'u8[8192]{0}', space=vmem, size = 0x2000, scoped, tag = 'input window, operand 0, single buffered']
    #allocation3 [shape = 's32[1]{0}', space=sflag, size = 0x4, scoped, tag = 'scoped memory for classifier_forward.1']
    #allocation4 [shape = 's32[1]{0}', space=sflag, size = 0x4, scoped, tag = 'scoped memory for classifier_forward.1']
    #allocation5 [shape = 'u8[131072]{0}', space=vmem, size = 0x20000, scoped, tag = 'input window, operand 1, single buffered']
    #allocation6 [shape = 's32[1]{0}', space=sflag, size = 0x4, scoped, tag = 'scoped memory for classifier_forward.1']
    #allocation7 [shape = 'u8[4096]{0}', space=vmem, size = 0x1000, scoped, tag = 'output window, operand 0, single buffered']
    %7 = vsyncpa [#allocation3], 0
    %8 = vsyncpa [#allocation6], 0
    %9 = vsyncpa [#allocation4], 0
    // Predicated region
    $region2: #{classifier_forward.1} parent=1 // pred_check
      _
    $region3: #{classifier_forward.1} parent=1 // pred_check_branch
      %11 = sbr.rel (0) target = $region5
    $region4: #{classifier_forward.1} parent=1 // pred_region
      %13 = vsyncadd [#allocation3], 0
      %s15 = sshll.u32 %s0, 4
      %s16 = int_to_ptr.hbm [resolvable:$true] %s15
      %s17 = sshll.u32 [#allocation2], 4
      %s18 = int_to_ptr.vmem [resolvable:$true] %s17
      %20 = dma.hbm_to_vmem [thread:$0]  %s16, 256, %s18, [#allocation3]
    $region5: #{classifier_forward.1} parent=1 // pred_fallthru
      _
    // Predicated region
    $region6: #{classifier_forward.1} parent=1 // pred_check
      _
    $region7: #{classifier_forward.1} parent=1 // pred_check_branch
      %22 = sbr.rel (0) target = $region9
    $region8: #{classifier_forward.1} parent=1 // pred_region
      %24 = vsyncadd [#allocation6], 0
      %s25 = sshll.u32 %s1, 4
      %s26 = int_to_ptr.hbm [resolvable:$true] %s25
      %s27 = sshll.u32 [#allocation5], 4
      %s28 = int_to_ptr.vmem [resolvable:$true] %s27
      %33 = dma.hbm_to_vmem [thread:$0]  %s26, 4096, %s28, [#allocation6], 128, 128, 8
    $region9: #{classifier_forward.1} parent=1 // pred_fallthru
      _
    // Predicated region
    $region10: #{classifier_forward.1} parent=1 // pred_check
      _
    $region11: #{classifier_forward.1} parent=1 // pred_check_branch
      %35 = sbr.rel (0) target = $region13
    $region12: #{classifier_forward.1} parent=1 // pred_region
      %37 = dma.done [#allocation3], 256
    $region13: #{classifier_forward.1} parent=1 // pred_fallthru
      _
    // Predicated region
    $region14: #{classifier_forward.1} parent=1 // pred_check
      _
    $region15: #{classifier_forward.1} parent=1 // pred_check_branch
      %39 = sbr.rel (0) target = $region17
    $region16: #{classifier_forward.1} parent=1 // pred_region
      %41 = dma.done [#allocation6], 4096
    $region17: #{classifier_forward.1} parent=1 // pred_fallthru
      _
    %v42 = vld [vmem:[#allocation2] sm:$0xff]
    %v43 = vld [vmem:[#allocation2 + $0x8] sm:$0xff]
    %v44 = vld [vmem:[#allocation5] sm:$0xff]
    %v45 = vld [vmem:[#allocation5 + $0x8] sm:$0xff]
    %v46 = vld [vmem:[#allocation5 + $0x10] sm:$0xff]
    %v47 = vld [vmem:[#allocation5 + $0x18] sm:$0xff]
    %v48 = vld [vmem:[#allocation5 + $0x20] sm:$0xff]
    %v49 = vld [vmem:[#allocation5 + $0x28] sm:$0xff]
    %v50 = vld [vmem:[#allocation5 + $0x30] sm:$0xff]
    %v51 = vld [vmem:[#allocation5 + $0x38] sm:$0xff]
    %v52 = vld [vmem:[#allocation5 + $0x40] sm:$0xff]
    %v53 = vld [vmem:[#allocation5 + $0x48] sm:$0xff]
    %v54 = vld [vmem:[#allocation5 + $0x50] sm:$0xff]
    %v55 = vld [vmem:[#allocation5 + $0x58] sm:$0xff]
    %v56 = vld [vmem:[#allocation5 + $0x60] sm:$0xff]
    %v57 = vld [vmem:[#allocation5 + $0x68] sm:$0xff]
    %v58 = vld [vmem:[#allocation5 + $0x70] sm:$0xff]
    %v59 = vld [vmem:[#allocation5 + $0x78] sm:$0xff]
    %v60 = vld [vmem:[#allocation5 + $0x80] sm:$0xff]
    %v61 = vld [vmem:[#allocation5 + $0x88] sm:$0xff]
    %v62 = vld [vmem:[#allocation5 + $0x90] sm:$0xff]
    %v63 = vld [vmem:[#allocation5 + $0x98] sm:$0xff]
    %v64 = vld [vmem:[#allocation5 + $0xa0] sm:$0xff]
    %v65 = vld [vmem:[#allocation5 + $0xa8] sm:$0xff]
    %v66 = vld [vmem:[#allocation5 + $0xb0] sm:$0xff]
    %v67 = vld [vmem:[#allocation5 + $0xb8] sm:$0xff]
    %v68 = vld [vmem:[#allocation5 + $0xc0] sm:$0xff]
    %v69 = vld [vmem:[#allocation5 + $0xc8] sm:$0xff]
    %v70 = vld [vmem:[#allocation5 + $0xd0] sm:$0xff]
    %v71 = vld [vmem:[#allocation5 + $0xd8] sm:$0xff]
    %v72 = vld [vmem:[#allocation5 + $0xe0] sm:$0xff]
    %v73 = vld [vmem:[#allocation5 + $0xe8] sm:$0xff]
    %v74 = vld [vmem:[#allocation5 + $0xf0] sm:$0xff]
    %v75 = vld [vmem:[#allocation5 + $0xf8] sm:$0xff]
    %76 = vmatpush.msra.mxu0 %v59
    %77 = vmatpush.msra.mxu0 %v58
    %78 = vmatpush.msra.mxu0 %v57
    %79 = vmatpush.msra.mxu0 %v56
    %80 = vmatpush.msra.mxu0 %v55
    %81 = vmatpush.msra.mxu0 %v54
    %82 = vmatpush.msra.mxu0 %v53
    %83 = vmatpush.msra.mxu0 %v52
    %84 = vmatpush.msra.mxu0 %v51
    %85 = vmatpush.msra.mxu0 %v50
    %86 = vmatpush.msra.mxu0 %v49
    %87 = vmatpush.msra.mxu0 %v48
    %88 = vmatpush.msra.mxu0 %v47
    %89 = vmatpush.msra.mxu0 %v46
    %90 = vmatpush.msra.mxu0 %v45
    %91 = vmatpush.msra.mxu0 %v44
    %92 = vmatmul.f32.gmra.mxu0 %v42
    %v93 = vpop.f32.mrf.mxu0
    %v94 = vadd.f32 0.0, %v93
    %95 = vdwg.mxu0
    %96 = vmatpush.msra.mxu0 %v75
    %97 = vmatpush.msra.mxu0 %v74
    %98 = vmatpush.msra.mxu0 %v73
    %99 = vmatpush.msra.mxu0 %v72
    %100 = vmatpush.msra.mxu0 %v71
    %101 = vmatpush.msra.mxu0 %v70
    %102 = vmatpush.msra.mxu0 %v69
    %103 = vmatpush.msra.mxu0 %v68
    %104 = vmatpush.msra.mxu0 %v67
    %105 = vmatpush.msra.mxu0 %v66
    %106 = vmatpush.msra.mxu0 %v65
    %107 = vmatpush.msra.mxu0 %v64
    %108 = vmatpush.msra.mxu0 %v63
    %109 = vmatpush.msra.mxu0 %v62
    %110 = vmatpush.msra.mxu0 %v61
    %111 = vmatpush.msra.mxu0 %v60
    %112 = vmatmul.f32.gmra.mxu0 %v43
    %v113 = vpop.f32.mrf.mxu0
    %v114 = vadd.f32 %v94, %v113
    %115 = vdwg.mxu0
    %116 = vst [vmem:[#allocation7] sm:$0xff] %v114
    // Predicated region
    $region18: #{classifier_forward.1} parent=1 // pred_check
      _
    $region19: #{classifier_forward.1} parent=1 // pred_check_branch
      %118 = sbr.rel (0) target = $region21
    $region20: #{classifier_forward.1} parent=1 // pred_region
      %120 = vsyncadd [#allocation4], 0
      %s122 = sshll.u32 [#allocation7], 4
      %s123 = int_to_ptr.vmem [resolvable:$true] %s122
      %s124 = sshll.u32 %s2, 4
      %s125 = int_to_ptr.hbm [resolvable:$true] %s124
      %127 = dma.vmem_to_hbm [thread:$0]  %s123, 128, %s125, [#allocation4]
    $region21: #{classifier_forward.1} parent=1 // pred_fallthru
      _
    // Predicated region
    $region22: #{classifier_forward.1} parent=1 // pred_check
      _
    $region23: #{classifier_forward.1} parent=1 // pred_check_branch
      %129 = sbr.rel (0) target = $region25
    $region24: #{classifier_forward.1} parent=1 // pred_region
      %131 = dma.done [#allocation4], 128
    $region25: #{classifier_forward.1} parent=1 // pred_fallthru
      _
    %132 = vsyncpa [#allocation3], 1
    %133 = vsyncpa [#allocation6], 1
    %134 = vsyncpa [#allocation4], 1

</llo_original>
